<compile_context>
chip_gen: v5e
topology: v5e:2x2
jax: 0.10.0
libtpu: 0.0.40
codegen_flags: <defaults>
</compile_context>

<pallas_src>
import functools

import jax
import jax.numpy as jnp
from jax.experimental import pallas as pl
from jax.experimental.pallas import tpu as pltpu


def _criterion_kernel(logits_ref, pbox_ref, tlab_ref, tbox_ref, out_ref, *,
                      num_classes, eos_coef, inv_num_boxes, inv_num_matched):
    f32 = jnp.float32
    # Cast in-kernel (inputs are DMA'd at native dtype; no wrapper up-casts).
    logits = logits_ref[...].astype(f32)      # (B, N, C)
    pboxes = pbox_ref[...].astype(f32)        # (B, N, 4)
    tlab = tlab_ref[...]                      # (B, T) int32
    tboxes = tbox_ref[...].astype(f32)        # (B, T, 4)

    B, N, C = logits.shape
    T = tboxes.shape[1]
    eps = 1e-7

    n_iota = jax.lax.broadcasted_iota(jnp.int32, (B, N, 1), 1)
    n_iota_f = n_iota.astype(f32)

    # ---------------- matcher (fused) + matched-pair losses ----------------
    # TODO(synk): the exact TransT/Hungarian matcher (class + GIoU costs,
    # one-to-one assignment) has no clean Pallas equivalent; a greedy
    # per-target L1-box argmin (lowest-index tie-break) is used instead.
    tclass = jnp.full((B, N, 1), num_classes, jnp.int32)   # "no-object" everywhere
    correct_sum = 0.0
    l1_sum = 0.0
    giou_sum = 0.0
    iou_sum = 0.0

    for t in range(T):   # T is tiny (1 for single-object tracking); unrolled
        # L1 cost of every query against target t: (B, N, 1)
        cost_t = jnp.zeros((B, N, 1), f32)
        for k in range(4):
            cost_t = cost_t + jnp.abs(pboxes[:, :, k:k + 1]
                                      - tboxes[:, t:t + 1, k:k + 1])
        min_c = jnp.min(cost_t, axis=1, keepdims=True)                 # (B,1,1)
        sel = jnp.min(jnp.where(cost_t == min_c, n_iota_f, f32(N)),
                      axis=1, keepdims=True)                           # lowest index among ties
        oh_t = (n_iota_f == sel).astype(f32)                           # (B,N,1) one-hot over N

        # scatter matched label into target_classes (later t wins, like the ref)
        lab_t = tlab[:, t:t + 1]                                       # (B,1) int32
        tclass = jnp.where(oh_t > 0.5, lab_t.reshape(B, 1, 1), tclass)

        # ---- class_error contribution: top-1 of the matched query's logits
        mlog = [jnp.sum(oh_t * logits[:, :, c:c + 1], axis=1) for c in range(C)]  # (B,1) each
        best = mlog[0]
        pred = jnp.zeros((B, 1), jnp.int32)
        for c in range(1, C):
            better = mlog[c] > best
            pred = jnp.where(better, c, pred)
            best = jnp.where(better, mlog[c], best)
        correct_sum = correct_sum + jnp.sum((pred == lab_t).astype(f32))

        # ---- matched boxes, per-coordinate (B,1) rows (no (M,4) column slices)
        scx = jnp.sum(oh_t * pboxes[:, :, 0:1], axis=1)
        scy = jnp.sum(oh_t * pboxes[:, :, 1:2], axis=1)
        sw = jnp.sum(oh_t * pboxes[:, :, 2:3], axis=1)
        sh = jnp.sum(oh_t * pboxes[:, :, 3:4], axis=1)
        tcx = tboxes[:, t:t + 1, 0:1].reshape(B, 1)
        tcy = tboxes[:, t:t + 1, 1:2].reshape(B, 1)
        tw = tboxes[:, t:t + 1, 2:3].reshape(B, 1)
        th = tboxes[:, t:t + 1, 3:4].reshape(B, 1)

        l1_sum = l1_sum + jnp.sum(jnp.abs(scx - tcx) + jnp.abs(scy - tcy)
                                  + jnp.abs(sw - tw) + jnp.abs(sh - th))

        sx1, sy1 = scx - 0.5 * sw, scy - 0.5 * sh
        sx2, sy2 = scx + 0.5 * sw, scy + 0.5 * sh
        tx1, ty1 = tcx - 0.5 * tw, tcy - 0.5 * th
        tx2, ty2 = tcx + 0.5 * tw, tcy + 0.5 * th
        area_s = (sx2 - sx1) * (sy2 - sy1)
        area_t = (tx2 - tx1) * (ty2 - ty1)
        iw = jnp.maximum(jnp.minimum(sx2, tx2) - jnp.maximum(sx1, tx1), 0.0)
        ih = jnp.maximum(jnp.minimum(sy2, ty2) - jnp.maximum(sy1, ty1), 0.0)
        inter = iw * ih
        union = area_s + area_t - inter
        iou = inter / (union + eps)                                    # eps: avoid NaN/inf
        cw = jnp.maximum(jnp.maximum(sx2, tx2) - jnp.minimum(sx1, tx1), 0.0)
        ch = jnp.maximum(jnp.maximum(sy2, ty2) - jnp.minimum(sy1, ty1), 0.0)
        area_c = cw * ch
        giou = iou - (area_c - union) / (area_c + eps)
        giou_sum = giou_sum + jnp.sum(1.0 - giou)
        iou_sum = iou_sum + jnp.sum(iou)

    # ---------------- weighted cross entropy over all (B, N) queries ----------------
    m = jnp.max(logits, axis=-1, keepdims=True)
    z = logits - m
    logp = z - jnp.log(jnp.sum(jnp.exp(z), axis=-1, keepdims=True))    # (B,N,C)
    if C == 2:
        # direct VPU select instead of one-hot x cross-lane reduce (C=2 case)
        nll = -jnp.where(tclass == 0, logp[:, :, 0:1], logp[:, :, 1:2])   # (B,N,1)
        wt = jnp.where(tclass == num_classes, eos_coef, 1.0)              # (B,N,1)
    else:
        cls_iota = jax.lax.broadcasted_iota(jnp.int32, (B, N, C), 2)
        oh = (cls_iota == tclass).astype(f32)
        w = jnp.where(jax.lax.broadcasted_iota(jnp.int32, (1, 1, C), 2) == num_classes,
                      eos_coef, 1.0)                                      # empty_weight, in-kernel
        nll = -jnp.sum(oh * logp, axis=-1, keepdims=True)
        wt = jnp.sum(oh * w, axis=-1, keepdims=True)
    loss_ce = jnp.sum(wt * nll) / jnp.sum(wt)

    class_error = 100.0 - 100.0 * correct_sum * inv_num_matched
    loss_bbox = l1_sum * inv_num_boxes        # 1/num_boxes pre-folded (static)
    loss_giou = giou_sum * inv_num_boxes
    iou_mean = iou_sum * inv_num_boxes

    # pack the 5 scalars into one lane-dense (1, 128) row -> unmasked vector store
    lane = jax.lax.broadcasted_iota(jnp.int32, out_ref.shape, 1)
    out_ref[...] = (jnp.where(lane == 0, loss_ce, 0.0)
                    + jnp.where(lane == 1, class_error, 0.0)
                    + jnp.where(lane == 2, loss_bbox, 0.0)
                    + jnp.where(lane == 3, loss_giou, 0.0)
                    + jnp.where(lane == 4, iou_mean, 0.0))


def set_criterion_forward(pred_logits, pred_boxes, tgt_labels, tgt_boxes,
                          num_classes=1, eos_coef=0.0625):
    """Losses ['labels', 'boxes']: loss_ce, class_error, loss_bbox, loss_giou, iou."""
    B, N, C = pred_logits.shape
    _, T, _ = tgt_boxes.shape

    if tgt_labels.dtype != jnp.int32:
        tgt_labels = tgt_labels.astype(jnp.int32)

    # num_boxes = clamp(B*T, min=1); static -> fold reciprocal into the kernel.
    # TODO(synk): no distributed all-reduce of num_boxes (single-host forward).
    num_boxes = float(max(B * T, 1))
    kernel = functools.partial(_criterion_kernel,
                               num_classes=int(num_classes),
                               eos_coef=float(eos_coef),
                               inv_num_boxes=1.0 / num_boxes,
                               inv_num_matched=1.0 / float(B * T))

    vmem = functools.partial(pl.BlockSpec, memory_space=pltpu.MemorySpace.VMEM)
    out = pl.pallas_call(
        kernel,
        out_shape=jax.ShapeDtypeStruct((1, 128), jnp.float32),
        in_specs=[vmem(), vmem(), vmem(), vmem()],
        out_specs=vmem(),
    )(pred_logits, pred_boxes, tgt_labels, tgt_boxes)

    return {'loss_ce': out[0, 0],
            'class_error': out[0, 1],
            'loss_bbox': out[0, 2],
            'loss_giou': out[0, 3],
            'iou': out[0, 4]}


if __name__ == "__main__":
    key = jax.random.PRNGKey(0)
    k1, k2, k3, k4 = jax.random.split(key, 4)

    B, N, T = 2, 8, 1              # batch, queries, targets-per-image
    num_classes = 1                # single-object tracking
    C = num_classes + 1

    pred_logits = jax.random.normal(k1, (B, N, C), jnp.float32)
    pred_boxes = jax.nn.sigmoid(jax.random.normal(k2, (B, N, 4), jnp.float32))

    tgt_cxcy = 0.2 + 0.6 * jax.random.uniform(k3, (B, T, 2), jnp.float32)
    tgt_wh = 0.1 + 0.3 * jax.random.uniform(k4, (B, T, 2), jnp.float32)
    tgt_boxes = jnp.concatenate([tgt_cxcy, tgt_wh], axis=-1)    # (B, T, 4) cxcywh
    tgt_labels = jnp.zeros((B, T), jnp.int32)                   # class 0 = object

    losses = set_criterion_forward(pred_logits, pred_boxes, tgt_labels, tgt_boxes,
                                   num_classes=num_classes, eos_coef=0.0625)
    jax.block_until_ready(losses)
    print("KERNEL_OK")
</pallas_src>

<mosaic_0001>
module attributes {stable_mosaic.version = 11 : i64} {
  func.func @_criterion_kernel(%arg0: memref<2x8x2xf32, #tpu.memory_space<vmem>>, %arg1: memref<2x8x4xf32, #tpu.memory_space<vmem>>, %arg2: memref<2x1xi32, #tpu.memory_space<vmem>>, %arg3: memref<2x1x4xf32, #tpu.memory_space<vmem>>, %arg4: memref<1x128xf32, #tpu.memory_space<vmem>>) attributes {dimension_semantics = [], scalar_prefetch = 0 : i64, scratch_operands = 0 : i64, tpu.core_type = #tpu.core_type<tc>} {
    %c0 = arith.constant 0 : index
    %c0_0 = arith.constant 0 : index
    %c0_1 = arith.constant 0 : index
    %0 = vector.load %arg0[%c0, %c0_0, %c0_1] : memref<2x8x2xf32, #tpu.memory_space<vmem>>, vector<2x8x2xf32>
    %c0_2 = arith.constant 0 : index
    %c0_3 = arith.constant 0 : index
    %c0_4 = arith.constant 0 : index
    %1 = vector.load %arg1[%c0_2, %c0_3, %c0_4] : memref<2x8x4xf32, #tpu.memory_space<vmem>>, vector<2x8x4xf32>
    %c0_5 = arith.constant 0 : index
    %c0_6 = arith.constant 0 : index
    %2 = vector.load %arg2[%c0_5, %c0_6] : memref<2x1xi32, #tpu.memory_space<vmem>>, vector<2x1xi32>
    %c0_7 = arith.constant 0 : index
    %c0_8 = arith.constant 0 : index
    %c0_9 = arith.constant 0 : index
    %3 = vector.load %arg3[%c0_7, %c0_8, %c0_9] : memref<2x1x4xf32, #tpu.memory_space<vmem>>, vector<2x1x4xf32>
    %4 = tpu.iota {dimensions = array<i32: 1>} : vector<2x8x1xi32>
    %5 = arith.sitofp %4 : vector<2x8x1xi32> to vector<2x8x1xf32>
    %c1_i32 = arith.constant 1 : i32
    %6 = vector.broadcast %c1_i32 : i32 to vector<2x8x1xi32>
    %cst = arith.constant 0.000000e+00 : f32
    %7 = vector.broadcast %cst : f32 to vector<2x8x1xf32>
    %8 = vector.extract_strided_slice %1 {offsets = [0, 0, 0], sizes = [2, 8, 1], strides = [1, 1, 1]} : vector<2x8x4xf32> to vector<2x8x1xf32>
    %9 = vector.extract_strided_slice %3 {offsets = [0, 0, 0], sizes = [2, 1, 1], strides = [1, 1, 1]} : vector<2x1x4xf32> to vector<2x1x1xf32>
    %10 = vector.broadcast %9 : vector<2x1x1xf32> to vector<2x8x1xf32>
    %11 = arith.subf %8, %10 : vector<2x8x1xf32>
    %12 = math.absf %11 : vector<2x8x1xf32>
    %13 = arith.addf %7, %12 : vector<2x8x1xf32>
    %14 = vector.extract_strided_slice %1 {offsets = [0, 0, 1], sizes = [2, 8, 1], strides = [1, 1, 1]} : vector<2x8x4xf32> to vector<2x8x1xf32>
    %15 = vector.extract_strided_slice %3 {offsets = [0, 0, 1], sizes = [2, 1, 1], strides = [1, 1, 1]} : vector<2x1x4xf32> to vector<2x1x1xf32>
    %16 = vector.broadcast %15 : vector<2x1x1xf32> to vector<2x8x1xf32>
    %17 = arith.subf %14, %16 : vector<2x8x1xf32>
    %18 = math.absf %17 : vector<2x8x1xf32>
    %19 = arith.addf %13, %18 : vector<2x8x1xf32>
    %20 = vector.extract_strided_slice %1 {offsets = [0, 0, 2], sizes = [2, 8, 1], strides = [1, 1, 1]} : vector<2x8x4xf32> to vector<2x8x1xf32>
    %21 = vector.extract_strided_slice %3 {offsets = [0, 0, 2], sizes = [2, 1, 1], strides = [1, 1, 1]} : vector<2x1x4xf32> to vector<2x1x1xf32>
    %22 = vector.broadcast %21 : vector<2x1x1xf32> to vector<2x8x1xf32>
    %23 = arith.subf %20, %22 : vector<2x8x1xf32>
    %24 = math.absf %23 : vector<2x8x1xf32>
    %25 = arith.addf %19, %24 : vector<2x8x1xf32>
    %26 = vector.extract_strided_slice %1 {offsets = [0, 0, 3], sizes = [2, 8, 1], strides = [1, 1, 1]} : vector<2x8x4xf32> to vector<2x8x1xf32>
    %27 = vector.extract_strided_slice %3 {offsets = [0, 0, 3], sizes = [2, 1, 1], strides = [1, 1, 1]} : vector<2x1x4xf32> to vector<2x1x1xf32>
    %28 = vector.broadcast %27 : vector<2x1x1xf32> to vector<2x8x1xf32>
    %29 = arith.subf %26, %28 : vector<2x8x1xf32>
    %30 = math.absf %29 : vector<2x8x1xf32>
    %31 = arith.addf %25, %30 : vector<2x8x1xf32>
    %cst_10 = arith.constant dense<0x7F800000> : vector<2x1xf32>
    %32 = vector.multi_reduction <minimumf>, %31, %cst_10 [1] : vector<2x8x1xf32> to vector<2x1xf32>
    %33 = vector.shape_cast %32 : vector<2x1xf32> to vector<2x1x1xf32>
    %34 = vector.broadcast %33 : vector<2x1x1xf32> to vector<2x8x1xf32>
    %35 = arith.cmpf oeq, %31, %34 : vector<2x8x1xf32>
    %cst_11 = arith.constant 8.000000e+00 : f32
    %36 = vector.broadcast %cst_11 : f32 to vector<2x8x1xf32>
    %37 = arith.select %35, %5, %36 : vector<2x8x1xi1>, vector<2x8x1xf32>
    %cst_12 = arith.constant dense<0x7F800000> : vector<2x1xf32>
    %38 = vector.multi_reduction <minimumf>, %37, %cst_12 [1] : vector<2x8x1xf32> to vector<2x1xf32>
    %39 = vector.shape_cast %38 : vector<2x1xf32> to vector<2x1x1xf32>
    %40 = vector.broadcast %39 : vector<2x1x1xf32> to vector<2x8x1xf32>
    %41 = arith.cmpf oeq, %5, %40 : vector<2x8x1xf32>
    %42 = arith.extui %41 : vector<2x8x1xi1> to vector<2x8x1xi32>
    %43 = arith.sitofp %42 : vector<2x8x1xi32> to vector<2x8x1xf32>
    %cst_13 = arith.constant 5.000000e-01 : f32
    %44 = vector.broadcast %cst_13 : f32 to vector<2x8x1xf32>
    %45 = arith.cmpf ogt, %43, %44 : vector<2x8x1xf32>
    %46 = vector.shape_cast %2 : vector<2x1xi32> to vector<2x1x1xi32>
    %47 = vector.shape_cast %46 : vector<2x1x1xi32> to vector<2x1x1xi32>
    %48 = vector.broadcast %47 : vector<2x1x1xi32> to vector<2x8x1xi32>
    %49 = arith.select %45, %48, %6 : vector<2x8x1xi1>, vector<2x8x1xi32>
    %50 = vector.extract_strided_slice %0 {offsets = [0, 0, 0], sizes = [2, 8, 1], strides = [1, 1, 1]} : vector<2x8x2xf32> to vector<2x8x1xf32>
    %51 = arith.mulf %43, %50 : vector<2x8x1xf32>
    %cst_14 = arith.constant dense<0.000000e+00> : vector<2x1xf32>
    %52 = vector.multi_reduction <add>, %51, %cst_14 [1] : vector<2x8x1xf32> to vector<2x1xf32>
    %53 = vector.extract_strided_slice %0 {offsets = [0, 0, 1], sizes = [2, 8, 1], strides = [1, 1, 1]} : vector<2x8x2xf32> to vector<2x8x1xf32>
    %54 = arith.mulf %43, %53 : vector<2x8x1xf32>
    %cst_15 = arith.constant dense<0.000000e+00> : vector<2x1xf32>
    %55 = vector.multi_reduction <add>, %54, %cst_15 [1] : vector<2x8x1xf32> to vector<2x1xf32>
    %c0_i32 = arith.constant 0 : i32
    %56 = vector.broadcast %c0_i32 : i32 to vector<2x1xi32>
    %57 = arith.cmpf ogt, %55, %52 : vector<2x1xf32>
    %c1_i32_16 = arith.constant 1 : i32
    %58 = vector.broadcast %c1_i32_16 : i32 to vector<2x1xi32>
    %59 = arith.select %57, %58, %56 : vector<2x1xi1>, vector<2x1xi32>
    %60 = arith.cmpi eq, %59, %2 : vector<2x1xi32>
    %61 = arith.extui %60 : vector<2x1xi1> to vector<2x1xi32>
    %62 = arith.sitofp %61 : vector<2x1xi32> to vector<2x1xf32>
    %63 = vector.shape_cast %62 : vector<2x1xf32> to vector<1x2x1xf32>
    %cst_17 = arith.constant dense<0.000000e+00> : vector<1xf32>
    %64 = vector.multi_reduction <add>, %63, %cst_17 [1, 2] : vector<1x2x1xf32> to vector<1xf32>
    %65 = vector.shape_cast %64 : vector<1xf32> to vector<1x1x1xf32>
    %66 = vector.extract %65[0, 0, 0] : f32 from vector<1x1x1xf32>
    %cst_18 = arith.constant 0.000000e+00 : f32
    %67 = arith.addf %cst_18, %66 : f32
    %68 = vector.extract_strided_slice %1 {offsets = [0, 0, 0], sizes = [2, 8, 1], strides = [1, 1, 1]} : vector<2x8x4xf32> to vector<2x8x1xf32>
    %69 = arith.mulf %43, %68 : vector<2x8x1xf32>
    %cst_19 = arith.constant dense<0.000000e+00> : vector<2x1xf32>
    %70 = vector.multi_reduction <add>, %69, %cst_19 [1] : vector<2x8x1xf32> to vector<2x1xf32>
    %71 = vector.extract_strided_slice %1 {offsets = [0, 0, 1], sizes = [2, 8, 1], strides = [1, 1, 1]} : vector<2x8x4xf32> to vector<2x8x1xf32>
    %72 = arith.mulf %43, %71 : vector<2x8x1xf32>
    %cst_20 = arith.constant dense<0.000000e+00> : vector<2x1xf32>
    %73 = vector.multi_reduction <add>, %72, %cst_20 [1] : vector<2x8x1xf32> to vector<2x1xf32>
    %74 = vector.extract_strided_slice %1 {offsets = [0, 0, 2], sizes = [2, 8, 1], strides = [1, 1, 1]} : vector<2x8x4xf32> to vector<2x8x1xf32>
    %75 = arith.mulf %43, %74 : vector<2x8x1xf32>
    %cst_21 = arith.constant dense<0.000000e+00> : vector<2x1xf32>
    %76 = vector.multi_reduction <add>, %75, %cst_21 [1] : vector<2x8x1xf32> to vector<2x1xf32>
    %77 = vector.extract_strided_slice %1 {offsets = [0, 0, 3], sizes = [2, 8, 1], strides = [1, 1, 1]} : vector<2x8x4xf32> to vector<2x8x1xf32>
    %78 = arith.mulf %43, %77 : vector<2x8x1xf32>
    %cst_22 = arith.constant dense<0.000000e+00> : vector<2x1xf32>
    %79 = vector.multi_reduction <add>, %78, %cst_22 [1] : vector<2x8x1xf32> to vector<2x1xf32>
    %80 = vector.extract_strided_slice %3 {offsets = [0, 0, 0], sizes = [2, 1, 1], strides = [1, 1, 1]} : vector<2x1x4xf32> to vector<2x1x1xf32>
    %81 = vector.shape_cast %80 : vector<2x1x1xf32> to vector<2x1xf32>
    %82 = vector.extract_strided_slice %3 {offsets = [0, 0, 1], sizes = [2, 1, 1], strides = [1, 1, 1]} : vector<2x1x4xf32> to vector<2x1x1xf32>
    %83 = vector.shape_cast %82 : vector<2x1x1xf32> to vector<2x1xf32>
    %84 = vector.extract_strided_slice %3 {offsets = [0, 0, 2], sizes = [2, 1, 1], strides = [1, 1, 1]} : vector<2x1x4xf32> to vector<2x1x1xf32>
    %85 = vector.shape_cast %84 : vector<2x1x1xf32> to vector<2x1xf32>
    %86 = vector.extract_strided_slice %3 {offsets = [0, 0, 3], sizes = [2, 1, 1], strides = [1, 1, 1]} : vector<2x1x4xf32> to vector<2x1x1xf32>
    %87 = vector.shape_cast %86 : vector<2x1x1xf32> to vector<2x1xf32>
    %88 = arith.subf %70, %81 : vector<2x1xf32>
    %89 = math.absf %88 : vector<2x1xf32>
    %90 = arith.subf %73, %83 : vector<2x1xf32>
    %91 = math.absf %90 : vector<2x1xf32>
    %92 = arith.addf %89, %91 : vector<2x1xf32>
    %93 = arith.subf %76, %85 : vector<2x1xf32>
    %94 = math.absf %93 : vector<2x1xf32>
    %95 = arith.addf %92, %94 : vector<2x1xf32>
    %96 = arith.subf %79, %87 : vector<2x1xf32>
    %97 = math.absf %96 : vector<2x1xf32>
    %98 = arith.addf %95, %97 : vector<2x1xf32>
    %99 = vector.shape_cast %98 : vector<2x1xf32> to vector<1x2x1xf32>
    %cst_23 = arith.constant dense<0.000000e+00> : vector<1xf32>
    %100 = vector.multi_reduction <add>, %99, %cst_23 [1, 2] : vector<1x2x1xf32> to vector<1xf32>
    %101 = vector.shape_cast %100 : vector<1xf32> to vector<1x1x1xf32>
    %102 = vector.extract %101[0, 0, 0] : f32 from vector<1x1x1xf32>
    %cst_24 = arith.constant 0.000000e+00 : f32
    %103 = arith.addf %cst_24, %102 : f32
    %cst_25 = arith.constant 5.000000e-01 : f32
    %104 = vector.broadcast %cst_25 : f32 to vector<2x1xf32>
    %105 = arith.mulf %104, %76 : vector<2x1xf32>
    %106 = arith.subf %70, %105 : vector<2x1xf32>
    %cst_26 = arith.constant 5.000000e-01 : f32
    %107 = vector.broadcast %cst_26 : f32 to vector<2x1xf32>
    %108 = arith.mulf %107, %79 : vector<2x1xf32>
    %109 = arith.subf %73, %108 : vector<2x1xf32>
    %cst_27 = arith.constant 5.000000e-01 : f32
    %110 = vector.broadcast %cst_27 : f32 to vector<2x1xf32>
    %111 = arith.mulf %110, %76 : vector<2x1xf32>
    %112 = arith.addf %70, %111 : vector<2x1xf32>
    %cst_28 = arith.constant 5.000000e-01 : f32
    %113 = vector.broadcast %cst_28 : f32 to vector<2x1xf32>
    %114 = arith.mulf %113, %79 : vector<2x1xf32>
    %115 = arith.addf %73, %114 : vector<2x1xf32>
    %cst_29 = arith.constant 5.000000e-01 : f32
    %116 = vector.broadcast %cst_29 : f32 to vector<2x1xf32>
    %117 = arith.mulf %116, %85 : vector<2x1xf32>
    %118 = arith.subf %81, %117 : vector<2x1xf32>
    %cst_30 = arith.constant 5.000000e-01 : f32
    %119 = vector.broadcast %cst_30 : f32 to vector<2x1xf32>
    %120 = arith.mulf %119, %87 : vector<2x1xf32>
    %121 = arith.subf %83, %120 : vector<2x1xf32>
    %cst_31 = arith.constant 5.000000e-01 : f32
    %122 = vector.broadcast %cst_31 : f32 to vector<2x1xf32>
    %123 = arith.mulf %122, %85 : vector<2x1xf32>
    %124 = arith.addf %81, %123 : vector<2x1xf32>
    %cst_32 = arith.constant 5.000000e-01 : f32
    %125 = vector.broadcast %cst_32 : f32 to vector<2x1xf32>
    %126 = arith.mulf %125, %87 : vector<2x1xf32>
    %127 = arith.addf %83, %126 : vector<2x1xf32>
    %128 = arith.subf %112, %106 : vector<2x1xf32>
    %129 = arith.subf %115, %109 : vector<2x1xf32>
    %130 = arith.mulf %128, %129 : vector<2x1xf32>
    %131 = arith.subf %124, %118 : vector<2x1xf32>
    %132 = arith.subf %127, %121 : vector<2x1xf32>
    %133 = arith.mulf %131, %132 : vector<2x1xf32>
    %134 = arith.minimumf %112, %124 : vector<2x1xf32>
    %135 = arith.maximumf %106, %118 : vector<2x1xf32>
    %136 = arith.subf %134, %135 : vector<2x1xf32>
    %cst_33 = arith.constant 0.000000e+00 : f32
    %137 = vector.broadcast %cst_33 : f32 to vector<2x1xf32>
    %138 = arith.maximumf %136, %137 : vector<2x1xf32>
    %139 = arith.minimumf %115, %127 : vector<2x1xf32>
    %140 = arith.maximumf %109, %121 : vector<2x1xf32>
    %141 = arith.subf %139, %140 : vector<2x1xf32>
    %cst_34 = arith.constant 0.000000e+00 : f32
    %142 = vector.broadcast %cst_34 : f32 to vector<2x1xf32>
    %143 = arith.maximumf %141, %142 : vector<2x1xf32>
    %144 = arith.mulf %138, %143 : vector<2x1xf32>
    %145 = arith.addf %130, %133 : vector<2x1xf32>
    %146 = arith.subf %145, %144 : vector<2x1xf32>
    %cst_35 = arith.constant 1.000000e-07 : f32
    %147 = vector.broadcast %cst_35 : f32 to vector<2x1xf32>
    %148 = arith.addf %146, %147 : vector<2x1xf32>
    %149 = arith.divf %144, %148 : vector<2x1xf32>
    %150 = arith.maximumf %112, %124 : vector<2x1xf32>
    %151 = arith.minimumf %106, %118 : vector<2x1xf32>
    %152 = arith.subf %150, %151 : vector<2x1xf32>
    %cst_36 = arith.constant 0.000000e+00 : f32
    %153 = vector.broadcast %cst_36 : f32 to vector<2x1xf32>
    %154 = arith.maximumf %152, %153 : vector<2x1xf32>
    %155 = arith.maximumf %115, %127 : vector<2x1xf32>
    %156 = arith.minimumf %109, %121 : vector<2x1xf32>
    %157 = arith.subf %155, %156 : vector<2x1xf32>
    %cst_37 = arith.constant 0.000000e+00 : f32
    %158 = vector.broadcast %cst_37 : f32 to vector<2x1xf32>
    %159 = arith.maximumf %157, %158 : vector<2x1xf32>
    %160 = arith.mulf %154, %159 : vector<2x1xf32>
    %161 = arith.subf %160, %146 : vector<2x1xf32>
    %cst_38 = arith.constant 1.000000e-07 : f32
    %162 = vector.broadcast %cst_38 : f32 to vector<2x1xf32>
    %163 = arith.addf %160, %162 : vector<2x1xf32>
    %164 = arith.divf %161, %163 : vector<2x1xf32>
    %165 = arith.subf %149, %164 : vector<2x1xf32>
    %cst_39 = arith.constant 1.000000e+00 : f32
    %166 = vector.broadcast %cst_39 : f32 to vector<2x1xf32>
    %167 = arith.subf %166, %165 : vector<2x1xf32>
    %168 = vector.shape_cast %167 : vector<2x1xf32> to vector<1x2x1xf32>
    %cst_40 = arith.constant dense<0.000000e+00> : vector<1xf32>
    %169 = vector.multi_reduction <add>, %168, %cst_40 [1, 2] : vector<1x2x1xf32> to vector<1xf32>
    %170 = vector.shape_cast %169 : vector<1xf32> to vector<1x1x1xf32>
    %171 = vector.extract %170[0, 0, 0] : f32 from vector<1x1x1xf32>
    %cst_41 = arith.constant 0.000000e+00 : f32
    %172 = arith.addf %cst_41, %171 : f32
    %173 = vector.shape_cast %149 : vector<2x1xf32> to vector<1x2x1xf32>
    %cst_42 = arith.constant dense<0.000000e+00> : vector<1xf32>
    %174 = vector.multi_reduction <add>, %173, %cst_42 [1, 2] : vector<1x2x1xf32> to vector<1xf32>
    %175 = vector.shape_cast %174 : vector<1xf32> to vector<1x1x1xf32>
    %176 = vector.extract %175[0, 0, 0] : f32 from vector<1x1x1xf32>
    %cst_43 = arith.constant 0.000000e+00 : f32
    %177 = arith.addf %cst_43, %176 : f32
    %cst_44 = arith.constant dense<0xFF800000> : vector<2x8xf32>
    %178 = vector.multi_reduction <maximumf>, %0, %cst_44 [2] : vector<2x8x2xf32> to vector<2x8xf32>
    %179 = vector.shape_cast %178 : vector<2x8xf32> to vector<2x8x1xf32>
    %180 = vector.broadcast %179 : vector<2x8x1xf32> to vector<2x8x2xf32>
    %181 = arith.subf %0, %180 : vector<2x8x2xf32>
    %182 = math.exp %181 : vector<2x8x2xf32>
    %cst_45 = arith.constant dense<0.000000e+00> : vector<2x8xf32>
    %183 = vector.multi_reduction <add>, %182, %cst_45 [2] : vector<2x8x2xf32> to vector<2x8xf32>
    %184 = vector.shape_cast %183 : vector<2x8xf32> to vector<2x8x1xf32>
    %185 = math.log %184 : vector<2x8x1xf32>
    %186 = vector.broadcast %185 : vector<2x8x1xf32> to vector<2x8x2xf32>
    %187 = arith.subf %181, %186 : vector<2x8x2xf32>
    %c0_i32_46 = arith.constant 0 : i32
    %188 = vector.broadcast %c0_i32_46 : i32 to vector<2x8x1xi32>
    %189 = arith.cmpi eq, %49, %188 : vector<2x8x1xi32>
    %190 = vector.extract_strided_slice %187 {offsets = [0, 0, 0], sizes = [2, 8, 1], strides = [1, 1, 1]} : vector<2x8x2xf32> to vector<2x8x1xf32>
    %191 = vector.extract_strided_slice %187 {offsets = [0, 0, 1], sizes = [2, 8, 1], strides = [1, 1, 1]} : vector<2x8x2xf32> to vector<2x8x1xf32>
    %192 = arith.select %189, %190, %191 : vector<2x8x1xi1>, vector<2x8x1xf32>
    %cst_47 = arith.constant 0.000000e+00 : f32
    %193 = vector.broadcast %cst_47 : f32 to vector<2x8x1xf32>
    %194 = arith.subf %193, %192 : vector<2x8x1xf32>
    %c1_i32_48 = arith.constant 1 : i32
    %195 = vector.broadcast %c1_i32_48 : i32 to vector<2x8x1xi32>
    %196 = arith.cmpi eq, %49, %195 : vector<2x8x1xi32>
    %cst_49 = arith.constant 6.250000e-02 : f32
    %cst_50 = arith.constant 1.000000e+00 : f32
    %197 = vector.broadcast %cst_49 : f32 to vector<2x8x1xf32>
    %198 = vector.broadcast %cst_50 : f32 to vector<2x8x1xf32>
    %199 = arith.select %196, %197, %198 : vector<2x8x1xi1>, vector<2x8x1xf32>
    %200 = arith.mulf %199, %194 : vector<2x8x1xf32>
    %201 = vector.shape_cast %200 : vector<2x8x1xf32> to vector<1x2x8x1xf32>
    %cst_51 = arith.constant dense<0.000000e+00> : vector<1xf32>
    %202 = vector.multi_reduction <add>, %201, %cst_51 [1, 2, 3] : vector<1x2x8x1xf32> to vector<1xf32>
    %203 = vector.shape_cast %202 : vector<1xf32> to vector<1x1x1x1xf32>
    %204 = vector.extract %203[0, 0, 0, 0] : f32 from vector<1x1x1x1xf32>
    %205 = vector.shape_cast %199 : vector<2x8x1xf32> to vector<1x2x8x1xf32>
    %cst_52 = arith.constant dense<0.000000e+00> : vector<1xf32>
    %206 = vector.multi_reduction <add>, %205, %cst_52 [1, 2, 3] : vector<1x2x8x1xf32> to vector<1xf32>
    %207 = vector.shape_cast %206 : vector<1xf32> to vector<1x1x1x1xf32>
    %208 = vector.extract %207[0, 0, 0, 0] : f32 from vector<1x1x1x1xf32>
    %209 = arith.divf %204, %208 : f32
    %cst_53 = arith.constant 1.000000e+02 : f32
    %210 = arith.mulf %cst_53, %67 : f32
    %cst_54 = arith.constant 5.000000e-01 : f32
    %211 = arith.mulf %210, %cst_54 : f32
    %cst_55 = arith.constant 1.000000e+02 : f32
    %212 = arith.subf %cst_55, %211 : f32
    %cst_56 = arith.constant 5.000000e-01 : f32
    %213 = arith.mulf %103, %cst_56 : f32
    %cst_57 = arith.constant 5.000000e-01 : f32
    %214 = arith.mulf %172, %cst_57 : f32
    %cst_58 = arith.constant 5.000000e-01 : f32
    %215 = arith.mulf %177, %cst_58 : f32
    %216 = tpu.iota {dimensions = array<i32: 1>} : vector<1x128xi32>
    %c0_i32_59 = arith.constant 0 : i32
    %217 = vector.broadcast %c0_i32_59 : i32 to vector<1x128xi32>
    %218 = arith.cmpi eq, %216, %217 : vector<1x128xi32>
    %cst_60 = arith.constant 0.000000e+00 : f32
    %219 = vector.broadcast %209 : f32 to vector<1x128xf32>
    %220 = vector.broadcast %cst_60 : f32 to vector<1x128xf32>
    %221 = arith.select %218, %219, %220 : vector<1x128xi1>, vector<1x128xf32>
    %c1_i32_61 = arith.constant 1 : i32
    %222 = vector.broadcast %c1_i32_61 : i32 to vector<1x128xi32>
    %223 = arith.cmpi eq, %216, %222 : vector<1x128xi32>
    %cst_62 = arith.constant 0.000000e+00 : f32
    %224 = vector.broadcast %212 : f32 to vector<1x128xf32>
    %225 = vector.broadcast %cst_62 : f32 to vector<1x128xf32>
    %226 = arith.select %223, %224, %225 : vector<1x128xi1>, vector<1x128xf32>
    %227 = arith.addf %221, %226 : vector<1x128xf32>
    %c2_i32 = arith.constant 2 : i32
    %228 = vector.broadcast %c2_i32 : i32 to vector<1x128xi32>
    %229 = arith.cmpi eq, %216, %228 : vector<1x128xi32>
    %cst_63 = arith.constant 0.000000e+00 : f32
    %230 = vector.broadcast %213 : f32 to vector<1x128xf32>
    %231 = vector.broadcast %cst_63 : f32 to vector<1x128xf32>
    %232 = arith.select %229, %230, %231 : vector<1x128xi1>, vector<1x128xf32>
    %233 = arith.addf %227, %232 : vector<1x128xf32>
    %c3_i32 = arith.constant 3 : i32
    %234 = vector.broadcast %c3_i32 : i32 to vector<1x128xi32>
    %235 = arith.cmpi eq, %216, %234 : vector<1x128xi32>
    %cst_64 = arith.constant 0.000000e+00 : f32
    %236 = vector.broadcast %214 : f32 to vector<1x128xf32>
    %237 = vector.broadcast %cst_64 : f32 to vector<1x128xf32>
    %238 = arith.select %235, %236, %237 : vector<1x128xi1>, vector<1x128xf32>
    %239 = arith.addf %233, %238 : vector<1x128xf32>
    %c4_i32 = arith.constant 4 : i32
    %240 = vector.broadcast %c4_i32 : i32 to vector<1x128xi32>
    %241 = arith.cmpi eq, %216, %240 : vector<1x128xi32>
    %cst_65 = arith.constant 0.000000e+00 : f32
    %242 = vector.broadcast %215 : f32 to vector<1x128xf32>
    %243 = vector.broadcast %cst_65 : f32 to vector<1x128xf32>
    %244 = arith.select %241, %242, %243 : vector<1x128xi1>, vector<1x128xf32>
    %245 = arith.addf %239, %244 : vector<1x128xf32>
    %c0_66 = arith.constant 0 : index
    %c0_67 = arith.constant 0 : index
    %246 = vector.load %arg4[%c0_66, %c0_67] : memref<1x128xf32, #tpu.memory_space<vmem>>, vector<1x128xf32>
    tpu.vector_store %arg4[%c0_66, %c0_67], %245 {strides = array<i32>} : memref<1x128xf32, #tpu.memory_space<vmem>>, vector<1x128xf32>,
    return
  }
}

</mosaic_0001>

<llo_original>
// kernel: tpu_custom_call.1
$region0: #{tpu_custom_call.1}
  #allocation0 [shape = 'u32[]', space=smem, size = 0x4, offset = 0x4, fixed_abs, tag = 'smem constant byte address 0x4 - core index']
  #allocation1 [shape = 'u32[72,128]{1,0:T(1,128)}', space=vmem, size = 0x9000, scoped, tag = 'internal scratch']
  %s0 = inlined_call_operand.vmem [shape: f32[2,8,2], index: 0, kind: input, shape index: {}]
  %s1 = inlined_call_operand.vmem [shape: f32[2,8,4], index: 1, kind: input, shape index: {}]
  %s2 = inlined_call_operand.vmem [shape: s32[2,1], index: 2, kind: input, shape index: {}]
  %s3 = inlined_call_operand.vmem [shape: f32[2,1,4], index: 3, kind: input, shape index: {}]
  %s4 = inlined_call_operand.hbm [shape: f32[1,128], index: 4, kind: output, shape index: {}]
  %s5 = sld [smem:[#allocation0]]
  $region26: #{tpu_custom_call.1} parent=0
    _
  %s7 = ssub.s32 1, %s5
  %s8 = scalar_select 0, %s7, %s5
  $region1: #{tpu_custom_call.1} parent=0
    #allocation2 [shape = 'u8[512]{0}', space=vmem, size = 0x400, scoped, tag = 'output window, operand 0, single buffered']
    #allocation3 [shape = 's32[1]{0}', space=sflag, size = 0x4, scoped, tag = 'scoped memory for tpu_custom_call.1']
    %9 = vsyncpa [#allocation3], 0
    // Predicated region
    $region2: #{tpu_custom_call.1} parent=1 // pred_check
      _
    $region3: #{tpu_custom_call.1} parent=1 // pred_check_branch
      %11 = sbr.rel (0) target = $region5
    $region4: #{tpu_custom_call.1} parent=1 // pred_region
      _
    $region5: #{tpu_custom_call.1} parent=1 // pred_fallthru
      _
    // Predicated region
    $region6: #{tpu_custom_call.1} parent=1 // pred_check
      _
    $region7: #{tpu_custom_call.1} parent=1 // pred_check_branch
      %13 = sbr.rel (0) target = $region9
    $region8: #{tpu_custom_call.1} parent=1 // pred_region
      _
    $region9: #{tpu_custom_call.1} parent=1 // pred_fallthru
      _
    // Predicated region
    $region10: #{tpu_custom_call.1} parent=1 // pred_check
      _
    $region11: #{tpu_custom_call.1} parent=1 // pred_check_branch
      %15 = sbr.rel (0) target = $region13
    $region12: #{tpu_custom_call.1} parent=1 // pred_region
      _
    $region13: #{tpu_custom_call.1} parent=1 // pred_fallthru
      _
    // Predicated region
    $region14: #{tpu_custom_call.1} parent=1 // pred_check
      _
    $region15: #{tpu_custom_call.1} parent=1 // pred_check_branch
      %17 = sbr.rel (0) target = $region17
    $region16: #{tpu_custom_call.1} parent=1 // pred_region
      _
    $region17: #{tpu_custom_call.1} parent=1 // pred_fallthru
      _
    %v18 = vld [vmem:[%s0] sm:$0xff]
    %v19 = vld [vmem:[%s0 + $0x8] sm:$0xff]
    %v20 = vld [vmem:[%s1] sm:$0xff]
    %v21 = vld [vmem:[%s1 + $0x8] sm:$0xff]
    %v22 = vld [vmem:[%s2] sm:$0x3]
    %v23 = vld [vmem:[%s3] sm:$0x1]
    %v24 = vld [vmem:[%s3 + $0x1] sm:$0x1]
    %v25 = vlaneseq
    %v26 = vshrl.u32 %v25, 7
    %v27 = vcvt.s32.f32 %v26
    %v30 = vperm.slane %v23, 0
    %v31 = vperm.slane %v24, 0
    %v34 = vsub.f32 %v20, %v30
    %v35 = vsub.f32 %v21, %v31
    %v36 = vand.u32 2147483647, %v34
    %v37 = vand.u32 2147483647, %v35
    %v38 = vadd.f32 %v36, 0.0
    %v39 = vadd.f32 %v37, 0.0
    %42 = vrot.lane.b32.xlu0 %v36, 127
    %v43 = vpop.permute.xlu0 %42
    %44 = vrot.lane.b32.xlu0 %v37, 127
    %v45 = vpop.permute.xlu0 %44
    %v48 = vadd.f32 %v38, %v43
    %v49 = vadd.f32 %v39, %v45
    %50 = vrot.lane.b32.xlu0 %v36, 126
    %v51 = vpop.permute.xlu0 %50
    %52 = vrot.lane.b32.xlu0 %v37, 126
    %v53 = vpop.permute.xlu0 %52
    %v56 = vadd.f32 %v48, %v51
    %v57 = vadd.f32 %v49, %v53
    %58 = vrot.lane.b32.xlu0 %v36, 125
    %v59 = vpop.permute.xlu0 %58
    %60 = vrot.lane.b32.xlu0 %v37, 125
    %v61 = vpop.permute.xlu0 %60
    %v64 = vadd.f32 %v56, %v59
    %v65 = vadd.f32 %v57, %v61
    %vm66 = vcmask 7168
    %v67 = vsel %vm66, %v64, inf
    %v68 = vrot.slane %v67, 4
    %v69 = vmin.f32 %v67, %v68
    %v70 = vrot.slane %v69, 2
    %v71 = vmin.f32 %v69, %v70
    %v72 = vrot.slane %v71, 1
    %v73 = vmin.f32 %v71, %v72
    %v74 = vsel %vm66, %v65, inf
    %v75 = vrot.slane %v74, 4
    %v76 = vmin.f32 %v74, %v75
    %v77 = vrot.slane %v76, 2
    %v78 = vmin.f32 %v76, %v77
    %v79 = vrot.slane %v78, 1
    %v80 = vmin.f32 %v78, %v79
    %vm81 = vcmp.eq.f32.partialorder %v64, %v73
    %vm82 = vcmp.eq.f32.partialorder %v65, %v80
    %v83 = vsel %vm81, %v27, 8.0
    %v84 = vsel %vm82, %v27, 8.0
    %v85 = vsel %vm66, %v83, inf
    %v86 = vrot.slane %v85, 4
    %v87 = vmin.f32 %v85, %v86
    %v88 = vrot.slane %v87, 2
    %v89 = vmin.f32 %v87, %v88
    %v90 = vrot.slane %v89, 1
    %v91 = vmin.f32 %v89, %v90
    %v92 = vsel %vm66, %v84, inf
    %v93 = vrot.slane %v92, 4
    %v94 = vmin.f32 %v92, %v93
    %v95 = vrot.slane %v94, 2
    %v96 = vmin.f32 %v94, %v95
    %v97 = vrot.slane %v96, 1
    %v98 = vmin.f32 %v96, %v97
    %vm99 = vcmp.eq.f32.partialorder %v27, %v91
    %vm100 = vcmp.eq.f32.partialorder %v27, %v98
    %v101 = vsel %vm99, 1, 0
    %v102 = vsel %vm100, 1, 0
    %v103 = vcvt.s32.f32 %v101
    %v104 = vcvt.s32.f32 %v102
    %vm105 = vcmp.gt.f32.partialorder %v103, 0.5
    %vm106 = vcmp.gt.f32.partialorder %v104, 0.5
    %v107 = vrot.slane %v22, 1
    %v108 = vperm.slane %v22, 0
    %v109 = vperm.slane %v107, 0
    %v110 = vsel %vm105, %v108, 1
    %v111 = vsel %vm106, %v109, 1
    %v112 = vmul.f32 %v103, %v18
    %v113 = vmul.f32 %v104, %v19
    %v114 = vsel %vm66, %v112, 0.0
    %v115 = vrot.slane %v114, 4
    %v116 = vadd.f32 %v114, %v115
    %v117 = vrot.slane %v116, 2
    %v118 = vadd.f32 %v116, %v117
    %v119 = vrot.slane %v118, 1
    %v120 = vadd.f32 %v118, %v119
    %v121 = vsel %vm66, %v113, 0.0
    %v122 = vrot.slane %v121, 4
    %v123 = vadd.f32 %v121, %v122
    %v124 = vrot.slane %v123, 2
    %v125 = vadd.f32 %v123, %v124
    %v126 = vrot.slane %v125, 1
    %v127 = vadd.f32 %v125, %v126
    %130 = vrot.lane.b32.xlu0 %v18, 127
    %v131 = vpop.permute.xlu0 %130
    %132 = vrot.lane.b32.xlu0 %v19, 127
    %v133 = vpop.permute.xlu0 %132
    %v136 = vmul.f32 %v103, %v131
    %v137 = vmul.f32 %v104, %v133
    %v138 = vsel %vm66, %v136, 0.0
    %v139 = vrot.slane %v138, 4
    %v140 = vadd.f32 %v138, %v139
    %v141 = vrot.slane %v140, 2
    %v142 = vadd.f32 %v140, %v141
    %v143 = vrot.slane %v142, 1
    %v144 = vadd.f32 %v142, %v143
    %v145 = vsel %vm66, %v137, 0.0
    %v146 = vrot.slane %v145, 4
    %v147 = vadd.f32 %v145, %v146
    %v148 = vrot.slane %v147, 2
    %v149 = vadd.f32 %v147, %v148
    %v150 = vrot.slane %v149, 1
    %v151 = vadd.f32 %v149, %v150
    %vm152 = vcmp.gt.f32.partialorder %v144, %v120
    %vm153 = vcmp.gt.f32.partialorder %v151, %v127
    %v154 = vsel %vm152, 1, 0
    %v155 = vsel %vm153, 1, 0
    %vm156 = vcmp.eq.s32.totalorder %v154, %v22
    %vm157 = vcmp.eq.s32.totalorder %v155, %v107
    %v158 = vsel %vm156, 1, 0
    %v159 = vsel %vm157, 1, 0
    %v160 = vcvt.s32.f32 %v158
    %v161 = vcvt.s32.f32 %v159
    %v164 = vrot.slane %v161, 7
    %vm165 = vcmask 1041409
    %v166 = vsel %vm165, %v164, %v160
    %vm168 = vcmask 1024
    %v169 = vsel %vm168, %v166, 0.0
    %170 = vadd.xlane.f32.xlu0 %v169
    %v171 = vpop.xlane.xlu0 %170
    %v172 = vrot.slane %v171, 4
    %v173 = vadd.f32 %v171, %v172
    %v174 = vrot.slane %v173, 2
    %v175 = vadd.f32 %v173, %v174
    %v176 = vrot.slane %v175, 1
    %v177 = vadd.f32 %v175, %v176
    %s178 = vtos %v177
    %s179 = sadd.f32 %s178, 0.0
    %v180 = vmul.f32 %v103, %v20
    %v181 = vmul.f32 %v104, %v21
    %v182 = vsel %vm66, %v180, 0.0
    %v183 = vrot.slane %v182, 4
    %v184 = vadd.f32 %v182, %v183
    %v185 = vrot.slane %v184, 2
    %v186 = vadd.f32 %v184, %v185
    %v187 = vrot.slane %v186, 1
    %v188 = vadd.f32 %v186, %v187
    %v189 = vsel %vm66, %v181, 0.0
    %v190 = vrot.slane %v189, 4
    %v191 = vadd.f32 %v189, %v190
    %v192 = vrot.slane %v191, 2
    %v193 = vadd.f32 %v191, %v192
    %v194 = vrot.slane %v193, 1
    %v195 = vadd.f32 %v193, %v194
    %198 = vrot.lane.b32.xlu0 %v20, 127
    %v199 = vpop.permute.xlu0 %198
    %200 = vrot.lane.b32.xlu0 %v21, 127
    %v201 = vpop.permute.xlu0 %200
    %v204 = vmul.f32 %v103, %v199
    %v205 = vmul.f32 %v104, %v201
    %v206 = vsel %vm66, %v204, 0.0
    %v207 = vrot.slane %v206, 4
    %v208 = vadd.f32 %v206, %v207
    %v209 = vrot.slane %v208, 2
    %v210 = vadd.f32 %v208, %v209
    %v211 = vrot.slane %v210, 1
    %v212 = vadd.f32 %v210, %v211
    %v213 = vsel %vm66, %v205, 0.0
    %v214 = vrot.slane %v213, 4
    %v215 = vadd.f32 %v213, %v214
    %v216 = vrot.slane %v215, 2
    %v217 = vadd.f32 %v215, %v216
    %v218 = vrot.slane %v217, 1
    %v219 = vadd.f32 %v217, %v218
    %220 = vrot.lane.b32.xlu0 %v20, 126
    %v221 = vpop.permute.xlu0 %220
    %222 = vrot.lane.b32.xlu0 %v21, 126
    %v223 = vpop.permute.xlu0 %222
    %v226 = vmul.f32 %v103, %v221
    %v227 = vmul.f32 %v104, %v223
    %v228 = vsel %vm66, %v226, 0.0
    %v229 = vrot.slane %v228, 4
    %v230 = vadd.f32 %v228, %v229
    %v231 = vrot.slane %v230, 2
    %v232 = vadd.f32 %v230, %v231
    %v233 = vrot.slane %v232, 1
    %v234 = vadd.f32 %v232, %v233
    %v235 = vsel %vm66, %v227, 0.0
    %v236 = vrot.slane %v235, 4
    %v237 = vadd.f32 %v235, %v236
    %v238 = vrot.slane %v237, 2
    %v239 = vadd.f32 %v237, %v238
    %v240 = vrot.slane %v239, 1
    %v241 = vadd.f32 %v239, %v240
    %242 = vrot.lane.b32.xlu0 %v20, 125
    %v243 = vpop.permute.xlu0 %242
    %244 = vrot.lane.b32.xlu0 %v21, 125
    %v245 = vpop.permute.xlu0 %244
    %v248 = vmul.f32 %v103, %v243
    %v249 = vmul.f32 %v104, %v245
    %v250 = vsel %vm66, %v248, 0.0
    %v251 = vrot.slane %v250, 4
    %v252 = vadd.f32 %v250, %v251
    %v253 = vrot.slane %v252, 2
    %v254 = vadd.f32 %v252, %v253
    %v255 = vrot.slane %v254, 1
    %v256 = vadd.f32 %v254, %v255
    %v257 = vsel %vm66, %v249, 0.0
    %v258 = vrot.slane %v257, 4
    %v259 = vadd.f32 %v257, %v258
    %v260 = vrot.slane %v259, 2
    %v261 = vadd.f32 %v259, %v260
    %v262 = vrot.slane %v261, 1
    %v263 = vadd.f32 %v261, %v262
    %v264 = vsub.f32 %v188, %v23
    %v265 = vsub.f32 %v195, %v24
    %v266 = vand.u32 2147483647, %v264
    %v267 = vand.u32 2147483647, %v265
    %268 = vrot.lane.b32.xlu0 %v30, 127
    %v269 = vpop.permute.xlu0 %268
    %270 = vrot.lane.b32.xlu0 %v31, 127
    %v271 = vpop.permute.xlu0 %270
    %v274 = vsub.f32 %v212, %v269
    %v275 = vsub.f32 %v219, %v271
    %v276 = vand.u32 2147483647, %v274
    %v277 = vand.u32 2147483647, %v275
    %v278 = vadd.f32 %v266, %v276
    %v279 = vadd.f32 %v267, %v277
    %280 = vrot.lane.b32.xlu0 %v30, 126
    %v281 = vpop.permute.xlu0 %280
    %282 = vrot.lane.b32.xlu0 %v31, 126
    %v283 = vpop.permute.xlu0 %282
    %v286 = vsub.f32 %v234, %v281
    %v287 = vsub.f32 %v241, %v283
    %v288 = vand.u32 2147483647, %v286
    %v289 = vand.u32 2147483647, %v287
    %v290 = vadd.f32 %v278, %v288
    %v291 = vadd.f32 %v279, %v289
    %292 = vrot.lane.b32.xlu0 %v30, 125
    %v293 = vpop.permute.xlu0 %292
    %294 = vrot.lane.b32.xlu0 %v31, 125
    %v295 = vpop.permute.xlu0 %294
    %v298 = vsub.f32 %v256, %v293
    %v299 = vsub.f32 %v263, %v295
    %v300 = vand.u32 2147483647, %v298
    %v301 = vand.u32 2147483647, %v299
    %v302 = vadd.f32 %v290, %v300
    %v303 = vadd.f32 %v291, %v301
    %v306 = vrot.slane %v303, 7
    %v307 = vsel %vm165, %v306, %v302
    %v309 = vsel %vm168, %v307, 0.0
    %310 = vadd.xlane.f32.xlu0 %v309
    %v311 = vpop.xlane.xlu0 %310
    %v312 = vrot.slane %v311, 4
    %v313 = vadd.f32 %v311, %v312
    %v314 = vrot.slane %v313, 2
    %v315 = vadd.f32 %v313, %v314
    %v316 = vrot.slane %v315, 1
    %v317 = vadd.f32 %v315, %v316
    %s318 = vtos %v317
    %s319 = sadd.f32 %s318, 0.0
    %v320 = vmul.f32 %v234, 0.5
    %v321 = vmul.f32 %v241, 0.5
    %v322 = vsub.f32 %v188, %v320
    %v323 = vsub.f32 %v195, %v321
    %v324 = vmul.f32 %v256, 0.5
    %v325 = vmul.f32 %v263, 0.5
    %v326 = vsub.f32 %v212, %v324
    %v327 = vsub.f32 %v219, %v325
    %v328 = vadd.f32 %v188, %v320
    %v329 = vadd.f32 %v195, %v321
    %v330 = vadd.f32 %v212, %v324
    %v331 = vadd.f32 %v219, %v325
    %v332 = vmul.f32 %v23, 0.5
    %v333 = vmul.f32 %v24, 0.5
    %336 = vrot.lane.b32.xlu0 %v332, 126
    %v337 = vpop.permute.xlu0 %336
    %338 = vrot.lane.b32.xlu0 %v333, 126
    %v339 = vpop.permute.xlu0 %338
    %v342 = vsub.f32 %v23, %v337
    %v343 = vsub.f32 %v24, %v339
    %v344 = vadd.f32 %v23, %v337
    %v345 = vadd.f32 %v24, %v339
    %v346 = vsub.f32 %v328, %v322
    %v347 = vsub.f32 %v329, %v323
    %v348 = vsub.f32 %v330, %v326
    %v349 = vsub.f32 %v331, %v327
    %v350 = vmul.f32 %v346, %v348
    %v351 = vmul.f32 %v347, %v349
    %v352 = vsub.f32 %v344, %v342
    %v353 = vsub.f32 %v345, %v343
    %356 = vrot.lane.b32.xlu0 %v352, 127
    %v357 = vpop.permute.xlu0 %356
    %358 = vrot.lane.b32.xlu0 %v353, 127
    %v359 = vpop.permute.xlu0 %358
    %v362 = vmul.f32 %v352, %v357
    %v363 = vmul.f32 %v353, %v359
    %v364 = vmin.f32 %v328, %v344
    %v365 = vmin.f32 %v329, %v345
    %v366 = vmax.f32 %v322, %v342
    %v367 = vmax.f32 %v323, %v343
    %v368 = vsub.f32 %v364, %v366
    %v369 = vsub.f32 %v365, %v367
    %v370 = vmax.f32 %v368, 0.0
    %v371 = vmax.f32 %v369, 0.0
    %v374 = vperm.slane %v344, 0
    %v375 = vperm.slane %v345, 0
    %376 = vrot.lane.b32.xlu0 %v374, 127
    %v377 = vpop.permute.xlu0 %376
    %378 = vrot.lane.b32.xlu0 %v375, 127
    %v379 = vpop.permute.xlu0 %378
    %v382 = vmin.f32 %v330, %v377
    %v383 = vmin.f32 %v331, %v379
    %v386 = vperm.slane %v342, 0
    %v387 = vperm.slane %v343, 0
    %388 = vrot.lane.b32.xlu0 %v386, 127
    %v389 = vpop.permute.xlu0 %388
    %390 = vrot.lane.b32.xlu0 %v387, 127
    %v391 = vpop.permute.xlu0 %390
    %v394 = vmax.f32 %v326, %v389
    %v395 = vmax.f32 %v327, %v391
    %v396 = vsub.f32 %v382, %v394
    %v397 = vsub.f32 %v383, %v395
    %v398 = vmax.f32 %v396, 0.0
    %v399 = vmax.f32 %v397, 0.0
    %v400 = vmul.f32 %v370, %v398
    %v401 = vmul.f32 %v371, %v399
    %v402 = vadd.f32 %v350, %v362
    %v403 = vadd.f32 %v351, %v363
    %v404 = vsub.f32 %v402, %v400
    %v405 = vsub.f32 %v403, %v401
    %v406 = vadd.f32 %v404, 1e-07
    %v407 = vadd.f32 %v405, 1e-07
    %v408 = vrcp.pop %v406
    %v409 = vmul.f32 %v406, %v408
    %v410 = vsub.f32 1.0, %v409
    %v411 = vmul.f32 %v408, %v410
    %v412 = vadd.f32 %v408, %v411
    %vm413 = vweird.f32 %v406
    %vm414 = vweird.f32 %v408
    %vm415 = vmor %vm413, %vm414
    %v416 = vsel %vm415, %v408, %v412
    %v417 = vand.u32 2147483647, %v406
    %vm418 = vcmp.eq.f32.partialorder %v417, 8.507059e+37
    %v419 = vand.u32 %v406, 2147483648
    %v420 = vor.u32 1.1754944e-38, %v419
    %v421 = vsel %vm418, %v420, %v416
    %v422 = vmul.f32 %v400, %v421
    %v423 = vrcp.pop %v407
    %v424 = vmul.f32 %v407, %v423
    %v425 = vsub.f32 1.0, %v424
    %v426 = vmul.f32 %v423, %v425
    %v427 = vadd.f32 %v423, %v426
    %vm428 = vweird.f32 %v407
    %vm429 = vweird.f32 %v423
    %vm430 = vmor %vm428, %vm429
    %v431 = vsel %vm430, %v423, %v427
    %v432 = vand.u32 2147483647, %v407
    %vm433 = vcmp.eq.f32.partialorder %v432, 8.507059e+37
    %v434 = vand.u32 %v407, 2147483648
    %v435 = vor.u32 1.1754944e-38, %v434
    %v436 = vsel %vm433, %v435, %v431
    %v437 = vmul.f32 %v401, %v436
    %v438 = vmax.f32 %v328, %v344
    %v439 = vmax.f32 %v329, %v345
    %v440 = vmin.f32 %v322, %v342
    %v441 = vmin.f32 %v323, %v343
    %v442 = vsub.f32 %v438, %v440
    %v443 = vsub.f32 %v439, %v441
    %v444 = vmax.f32 %v442, 0.0
    %v445 = vmax.f32 %v443, 0.0
    %v446 = vmax.f32 %v330, %v377
    %v447 = vmax.f32 %v331, %v379
    %v448 = vmin.f32 %v326, %v389
    %v449 = vmin.f32 %v327, %v391
    %v450 = vsub.f32 %v446, %v448
    %v451 = vsub.f32 %v447, %v449
    %v452 = vmax.f32 %v450, 0.0
    %v453 = vmax.f32 %v451, 0.0
    %v454 = vmul.f32 %v444, %v452
    %v455 = vmul.f32 %v445, %v453
    %v456 = vsub.f32 %v454, %v404
    %v457 = vsub.f32 %v455, %v405
    %v458 = vadd.f32 %v454, 1e-07
    %v459 = vadd.f32 %v455, 1e-07
    %v460 = vrcp.pop %v458
    %v461 = vmul.f32 %v458, %v460
    %v462 = vsub.f32 1.0, %v461
    %v463 = vmul.f32 %v460, %v462
    %v464 = vadd.f32 %v460, %v463
    %vm465 = vweird.f32 %v458
    %vm466 = vweird.f32 %v460
    %vm467 = vmor %vm465, %vm466
    %v468 = vsel %vm467, %v460, %v464
    %v469 = vand.u32 2147483647, %v458
    %vm470 = vcmp.eq.f32.partialorder %v469, 8.507059e+37
    %v471 = vand.u32 %v458, 2147483648
    %v472 = vor.u32 1.1754944e-38, %v471
    %v473 = vsel %vm470, %v472, %v468
    %v474 = vmul.f32 %v456, %v473
    %v475 = vrcp.pop %v459
    %v476 = vmul.f32 %v459, %v475
    %v477 = vsub.f32 1.0, %v476
    %v478 = vmul.f32 %v475, %v477
    %v479 = vadd.f32 %v475, %v478
    %vm480 = vweird.f32 %v459
    %vm481 = vweird.f32 %v475
    %vm482 = vmor %vm480, %vm481
    %v483 = vsel %vm482, %v475, %v479
    %v484 = vand.u32 2147483647, %v459
    %vm485 = vcmp.eq.f32.partialorder %v484, 8.507059e+37
    %v486 = vand.u32 %v459, 2147483648
    %v487 = vor.u32 1.1754944e-38, %v486
    %v488 = vsel %vm485, %v487, %v483
    %v489 = vmul.f32 %v457, %v488
    %v490 = vsub.f32 %v422, %v474
    %v491 = vsub.f32 %v437, %v489
    %v492 = vsub.f32 1.0, %v490
    %v493 = vsub.f32 1.0, %v491
    %v496 = vrot.slane %v493, 7
    %v497 = vsel %vm165, %v496, %v492
    %v499 = vsel %vm168, %v497, 0.0
    %500 = vadd.xlane.f32.xlu0 %v499
    %v501 = vpop.xlane.xlu0 %500
    %v502 = vrot.slane %v501, 4
    %v503 = vadd.f32 %v501, %v502
    %v504 = vrot.slane %v503, 2
    %v505 = vadd.f32 %v503, %v504
    %v506 = vrot.slane %v505, 1
    %v507 = vadd.f32 %v505, %v506
    %s508 = vtos %v507
    %s509 = sadd.f32 %s508, 0.0
    %v512 = vrot.slane %v437, 7
    %v513 = vsel %vm165, %v512, %v422
    %v515 = vsel %vm168, %v513, 0.0
    %516 = vadd.xlane.f32.xlu0 %v515
    %v517 = vpop.xlane.xlu0 %516
    %v518 = vrot.slane %v517, 4
    %v519 = vadd.f32 %v517, %v518
    %v520 = vrot.slane %v519, 2
    %v521 = vadd.f32 %v519, %v520
    %v522 = vrot.slane %v521, 1
    %v523 = vadd.f32 %v521, %v522
    %s524 = vtos %v523
    %s525 = sadd.f32 %s524, 0.0
    %vm526 = vcmask 15360
    %v527 = vsel %vm526, %v18, -inf
    %528 = vmax.xlane.f32.xlu0 %v527
    %v529 = vpop.xlane.xlu0 %528
    %v530 = vsel %vm526, %v19, -inf
    %531 = vmax.xlane.f32.xlu0 %v530
    %v532 = vpop.xlane.xlu0 %531
    %v533 = vsub.f32 %v18, %v529
    %v534 = vsub.f32 %v19, %v532
    %v535 = vmul.f32 %v533, 1.442695
    %v536 = vpow.pop %v535
    %v537 = vmul.f32 %v534, 1.442695
    %v538 = vpow.pop %v537
    %v539 = vsel %vm526, %v536, 0.0
    %540 = vadd.xlane.f32.xlu0 %v539
    %v541 = vpop.xlane.xlu0 %540
    %v542 = vsel %vm526, %v538, 0.0
    %543 = vadd.xlane.f32.xlu0 %v542
    %v544 = vpop.xlane.xlu0 %543
    %v545 = vlog2.pop %v541
    %v546 = vmul.f32 %v545, 0.6931472
    %v547 = vlog2.pop %v544
    %v548 = vmul.f32 %v547, 0.6931472
    %v549 = vsub.f32 %v533, %v546
    %v550 = vsub.f32 %v534, %v548
    %vm551 = vcmp.eq.s32.totalorder %v110, 0
    %vm552 = vcmp.eq.s32.totalorder %v111, 0
    %555 = vrot.lane.b32.xlu0 %v549, 127
    %v556 = vpop.permute.xlu0 %555
    %557 = vrot.lane.b32.xlu0 %v550, 127
    %v558 = vpop.permute.xlu0 %557
    %v561 = vsel %vm551, %v549, %v556
    %v562 = vsel %vm552, %v550, %v558
    %v563 = vsub.f32 0.0, %v561
    %v564 = vsub.f32 0.0, %v562
    %vm565 = vcmp.eq.s32.totalorder %v110, 1
    %vm566 = vcmp.eq.s32.totalorder %v111, 1
    %v567 = vsel %vm565, 0.0625, 1.0
    %v568 = vsel %vm566, 0.0625, 1.0
    %v569 = vmul.f32 %v567, %v563
    %v570 = vmul.f32 %v568, %v564
    %v571 = vsel %vm66, %v569, 0.0
    %v572 = vsel %vm66, %v570, 0.0
    %v573 = vadd.f32 %v571, %v572
    %574 = vadd.xlane.f32.xlu0 %v573
    %v575 = vpop.xlane.xlu0 %574
    %v576 = vrot.slane %v575, 4
    %v577 = vadd.f32 %v575, %v576
    %v578 = vrot.slane %v577, 2
    %v579 = vadd.f32 %v577, %v578
    %v580 = vrot.slane %v579, 1
    %v581 = vadd.f32 %v579, %v580
    %s582 = vtos %v581
    %v583 = vsel %vm66, %v567, 0.0
    %v584 = vsel %vm66, %v568, 0.0
    %v585 = vadd.f32 %v583, %v584
    %586 = vadd.xlane.f32.xlu0 %v585
    %v587 = vpop.xlane.xlu0 %586
    %v588 = vrot.slane %v587, 4
    %v589 = vadd.f32 %v587, %v588
    %v590 = vrot.slane %v589, 2
    %v591 = vadd.f32 %v589, %v590
    %v592 = vrot.slane %v591, 1
    %v593 = vadd.f32 %v591, %v592
    %s594 = vtos %v593
    %v595 = vstv %s594
    %v596 = vrcp.pop %v595
    %v597 = vmul.f32 %v595, %v596
    %v598 = vsub.f32 1.0, %v597
    %v599 = vmul.f32 %v596, %v598
    %v600 = vadd.f32 %v596, %v599
    %vm601 = vweird.f32 %v595
    %vm602 = vweird.f32 %v596
    %vm603 = vmor %vm601, %vm602
    %v604 = vsel %vm603, %v596, %v600
    %v605 = vand.u32 2147483647, %v595
    %vm606 = vcmp.eq.f32.partialorder %v605, 8.507059e+37
    %v607 = vand.u32 %v595, 2147483648
    %v608 = vor.u32 1.1754944e-38, %v607
    %v609 = vsel %vm606, %v608, %v604
    %s610 = vtos %v609
    %s611 = smul.f32 %s582, %s610
    %s612 = smul.f32 %s179, 100.0
    %s613 = smul.f32 %s612, 0.5
    %s614 = ssub.f32 100.0, %s613
    %s615 = smul.f32 %s319, 0.5
    %s616 = smul.f32 %s509, 0.5
    %s617 = smul.f32 %s525, 0.5
    %v618 = vlaneseq
    %v619 = vand.u32 %v618, 127
    %vm620 = vcmp.eq.s32.totalorder %v619, 0
    %v621 = vstv %s611
    %v622 = vsel %vm620, %v621, 0.0
    %vm623 = vcmp.eq.s32.totalorder %v619, 1
    %v624 = vstv %s614
    %v625 = vsel %vm623, %v624, 0.0
    %v626 = vadd.f32 %v622, %v625
    %vm627 = vcmp.eq.s32.totalorder %v619, 2
    %v628 = vstv %s615
    %v629 = vsel %vm627, %v628, 0.0
    %v630 = vadd.f32 %v626, %v629
    %vm631 = vcmp.eq.s32.totalorder %v619, 3
    %v632 = vstv %s616
    %v633 = vsel %vm631, %v632, 0.0
    %v634 = vadd.f32 %v630, %v633
    %vm635 = vcmp.eq.s32.totalorder %v619, 4
    %v636 = vstv %s617
    %v637 = vsel %vm635, %v636, 0.0
    %v638 = vadd.f32 %v634, %v637
    %639 = vst [vmem:[#allocation2] sm:$0x1] %v638
    // Predicated region
    $region18: #{tpu_custom_call.1} parent=1 // pred_check
      _
    $region19: #{tpu_custom_call.1} parent=1 // pred_check_branch
      %641 = sbr.rel (0) target = $region21
    $region20: #{tpu_custom_call.1} parent=1 // pred_region
      %643 = vsyncadd [#allocation3], 0
      %s645 = sshll.u32 [#allocation2], 4
      %s646 = int_to_ptr.vmem [resolvable:$true] %s645
      %s647 = sshll.u32 %s4, 4
      %s648 = int_to_ptr.hbm [resolvable:$true] %s647
      %650 = dma.vmem_to_hbm [thread:$0]  %s646, 16, %s648, [#allocation3]
    $region21: #{tpu_custom_call.1} parent=1 // pred_fallthru
      _
    // Predicated region
    $region22: #{tpu_custom_call.1} parent=1 // pred_check
      _
    $region23: #{tpu_custom_call.1} parent=1 // pred_check_branch
      %652 = sbr.rel (0) target = $region25
    $region24: #{tpu_custom_call.1} parent=1 // pred_region
      %654 = dma.done [#allocation3], 16
    $region25: #{tpu_custom_call.1} parent=1 // pred_fallthru
      _
    %655 = vsyncpa [#allocation3], 1

</llo_original>
